<compile_context>
chip_gen: v7x
topology: tpu7x:2x2x1
jax: 0.10.0
libtpu: 0.0.40
codegen_flags: <defaults>
</compile_context>

<pallas_src>
import math

import jax
import jax.numpy as jnp
from jax.experimental import pallas as pl
from jax.experimental.pallas import tpu as pltpu

S = None          # feature-magnitude scale; None => multiply by per-row ||features|| (module default)
MARGIN = 0.5      # additive angular margin m (module default)
EPS = 1e-12       # torch.nn.functional.normalize default eps
CLAMP_EPS = 1e-5  # clamp used by the reference before acos / after adding the margin
COS_M = math.cos(MARGIN)
SIN_M = math.sin(MARGIN)


def angular_margin_kernel(feat_ref, inv_f_ref, scale_ref, labels_ref, w_ref, out_ref):
    tc = out_ref.shape[1]

    # MXU: bf16 matmul with f32 accumulate.  Weights are already column-normalized in the
    # wrapper; the row normalization folds in as a single (TB,1)-broadcast multiply.
    raw = jnp.dot(feat_ref[...], w_ref[...],
                  preferred_element_type=jnp.float32)      # (TB, TC)
    cos = raw * inv_f_ref[...]                             # cos_theta

    # ArcFace margin without acos:
    #   theta = acos(clamp(cos))  =>  cos(theta) = c, sin(theta) = sqrt(1 - c^2)
    #   theta_m = clamp(theta + m*onehot, 1e-5, pi)
    #   cos(theta_m) = c*cos(m) - sqrt(1-c^2)*sin(m), or -1 when theta + m > pi (c < -cos(m)).
    # Non-label columns (and rows with label < 0) reduce to clamp(cos).
    c = jnp.clip(cos, -1.0 + CLAMP_EPS, 1.0 - CLAMP_EPS)
    sin_t = jnp.sqrt(jnp.maximum(1.0 - c * c, 0.0))
    cos_margined = jnp.where(c < -COS_M, -1.0, c * COS_M - sin_t * SIN_M)

    # Label mask: (1, TC) iota + hoisted scalar column offset, broadcast against the
    # (TB, 1) labels block in the compare (no full (TB, TC) int32 tile).
    labels = labels_ref[...]                               # (TB, 1) i32
    col = pl.program_id(1) * tc + jax.lax.broadcasted_iota(jnp.int32, (1, tc), 1)
    hit = (col == labels) & (labels >= 0)                  # (TB, TC)
    cos_theta_m = jnp.where(hit, cos_margined, c)          # == cos_theta + d_theta of the reference

    # Epilogue: single fused row-scale multiply (precomputed ||f||, or s).
    out_ref[...] = (scale_ref[...] * cos_theta_m).astype(out_ref.dtype)


def _round_up(x, n):
    return (x + n - 1) // n * n


def _vmem_estimate(tb, tc, d, out_bytes):
    # Double-buffered BlockSpec working set: features(bf16) + weights(bf16) + output tile
    # + the three (TB,1) per-row blocks (inv_f f32, scale f32, labels i32).
    per_step = tb * d * 2 + d * tc * 2 + tb * tc * out_bytes + tb * (4 + 4 + 4)
    return 2 * per_step


def angular_margin_logits(features, w, labels, *, tb=None, tc=None,
                          out_dtype=jnp.float32, vmem_limit_bytes=None):
    """features: (B, D) f32, w: (D, C) f32, labels: (B,) int (-1 == unknown) -> (B, C)."""
    B, D = features.shape
    D2, C = w.shape
    assert D == D2
    out_bytes = jnp.dtype(out_dtype).itemsize

    # Tile selection.  TB is the primary knob (each extra B-tile re-reads all of W from
    # HBM); default to the whole padded batch up to 1024 rows, shrinking in 256-steps to
    # keep the double-buffered working set under ~24 MiB (fits v7x's 64 MiB physical /
    # 32 MiB scoped VMEM as well as v5e/v6e).  TC stays lane dense (multiple of 128).
    budget = 24 << 20
    if tc is None:
        tc = min(512, _round_up(C, 128))
    if tb is None:
        tb = _round_up(B, 8) if B <= 1024 else 1024
        while tb > 256 and _vmem_estimate(tb, tc, D, out_bytes) > budget:
            tb = max(256, _round_up(tb - 256, 8))
    while tc > 128 and _vmem_estimate(tb, tc, D, out_bytes) > budget:
        tc -= 128

    Bp = _round_up(B, tb)
    Cp = _round_up(C, tc)

    ff = features.astype(jnp.float32)
    wf = w.astype(jnp.float32)

    # One-shot wrapper-side prep (single fused XLA passes, hoisted out of the per-tile body):
    #   * per-class column normalization folded into the bf16 weight copy (f32 norm, then cast),
    #   * per-row 1/max(||f||, eps) and the output row scale (||f|| when s is None, else s).
    inv_wn = jax.lax.rsqrt(
        jnp.maximum(jnp.sum(wf * wf, axis=0, keepdims=True), EPS * EPS))   # (1, C)
    w_n = (wf * inv_wn).astype(jnp.bfloat16)                               # (D, C) bf16

    sumsq = jnp.sum(ff * ff, axis=1, keepdims=True)                        # (B, 1)
    inv_f = jax.lax.rsqrt(jnp.maximum(sumsq, EPS * EPS))                   # 1/max(||f||, eps)
    if S is None:
        scale = jnp.sqrt(sumsq)                                            # torch.linalg.norm(features, dim=1)
    else:
        scale = jnp.full((B, 1), float(S), jnp.float32)

    f_bf = ff.astype(jnp.bfloat16)

    # TODO(synk): labels=None evaluation branch (d_theta == 0 exactly) is approximated by
    # passing label=-1 per row; identical up to the reference's 1e-5 cos clamp.
    lbl = labels.astype(jnp.int32).reshape(B, 1)

    if Bp != B:
        f_bf = jnp.pad(f_bf, ((0, Bp - B), (0, 0)))
        inv_f = jnp.pad(inv_f, ((0, Bp - B), (0, 0)))      # padded rows: cos=0, scale=0 -> output 0
        scale = jnp.pad(scale, ((0, Bp - B), (0, 0)))
        lbl = jnp.pad(lbl, ((0, Bp - B), (0, 0)), constant_values=-1)
    if Cp != C:
        w_n = jnp.pad(w_n, ((0, 0), (0, Cp - C)))

    if vmem_limit_bytes is None:
        # Explicit scoped-VMEM limit derived from the tile estimate; default tiles keep this
        # at 32 MiB (safe on v5e/v6e/v7x).  User-supplied huge tiles are capped at 96 MiB
        # (keep tiles small on v7x: 64 MiB physical VMEM per TC).
        vmem_limit_bytes = min(max(32 << 20, _vmem_estimate(tb, tc, D, out_bytes) + (4 << 20)),
                               96 << 20)

    grid = (Bp // tb, Cp // tc)
    # Both axes "parallel": on v7x (2 TCs) megacore sharding uses whichever axis has >= 2
    # iterations (with class-heavy C and a single B-tile, that's the class axis).

    out = pl.pallas_call(
        angular_margin_kernel,
        out_shape=jax.ShapeDtypeStruct((Bp, Cp), out_dtype),
        grid_spec=pltpu.PrefetchScalarGridSpec(
            num_scalar_prefetch=0,
            grid=grid,
            in_specs=[
                pl.BlockSpec((tb, D), lambda i, j: (i, 0)),   # features bf16 (fetched once per B-tile)
                pl.BlockSpec((tb, 1), lambda i, j: (i, 0)),   # 1/||f||   f32
                pl.BlockSpec((tb, 1), lambda i, j: (i, 0)),   # row scale f32 (||f|| or s)
                # Labels stay as a (TB, 1) int32 VMEM block: the mask compare against the
                # class-index iota needs a vreg (SMEM is scalar-access only).
                pl.BlockSpec((tb, 1), lambda i, j: (i, 0)),
                pl.BlockSpec((D, tc), lambda i, j: (0, j)),   # column-normalized weights bf16
            ],
            out_specs=pl.BlockSpec((tb, tc), lambda i, j: (i, j)),
        ),
        compiler_params=pltpu.CompilerParams(
            dimension_semantics=("parallel", "parallel"),
            vmem_limit_bytes=vmem_limit_bytes),
    )(f_bf, inv_f, scale, lbl, w_n)

    return out[:B, :C]


def xavier_normal(key, in_features, out_features):
    # nn.init.xavier_normal_ on a (in_features, out_features) tensor, gain=1.
    std = math.sqrt(2.0 / (in_features + out_features))
    return std * jax.random.normal(key, (in_features, out_features), dtype=jnp.float32)


if __name__ == "__main__":
    # Small shapes; explicit tb=8, tc=128 pads to (16, 256) -> a 2x2 grid of (8, 128) tiles
    # (exercises padding + tiling + the label mask offset on grid axis 1).
    in_features, out_features, batch = 64, 200, 12

    key = jax.random.PRNGKey(0)
    k_w, k_f, k_l = jax.random.split(key, 3)

    w = xavier_normal(k_w, in_features, out_features)
    features = jax.random.normal(k_f, (batch, in_features), dtype=jnp.float32)
    labels = jax.random.randint(k_l, (batch,), 0, out_features, dtype=jnp.int32)
    labels = labels.at[0].set(-1)   # one "unknown" row exercises the labels>=0 gating

    logits = angular_margin_logits(features, w, labels, tb=8, tc=128)
    jax.block_until_ready(logits)
    assert logits.shape == (batch, out_features)

    # Also run the default (auto-tile) path once to make sure the tile heuristics compile.
    logits_auto = angular_margin_logits(features, w, labels)
    jax.block_until_ready(logits_auto)

    # Pure-JAX f32 reference (same math as the PyTorch forward, acos formulation).
    w_n = w / jnp.maximum(jnp.linalg.norm(w, axis=0, keepdims=True), EPS)
    f_n = features / jnp.maximum(jnp.linalg.norm(features, axis=1, keepdims=True), EPS)
    cos = f_n @ w_n
    theta = jnp.arccos(jnp.clip(cos, -1.0 + CLAMP_EPS, 1.0 - CLAMP_EPS))
    onehot = jax.nn.one_hot(labels, out_features, dtype=jnp.float32)
    kn = (labels >= 0).astype(jnp.float32)[:, None]
    theta_m = jnp.clip(theta + MARGIN * onehot * kn, CLAMP_EPS, math.pi)
    d_theta = jnp.cos(theta_m) - cos
    scale = jnp.linalg.norm(features, axis=1, keepdims=True) if S is None else S
    ref = scale * (cos + d_theta)

    err = jnp.max(jnp.abs(logits - ref))
    err_auto = jnp.max(jnp.abs(logits_auto - ref))
    # bf16 MXU operands -> expect ~1e-3 .. 1e-2 absolute error at this logit scale.
    assert err < 5e-2, f"max abs err {err}"
    assert err_auto < 5e-2, f"max abs err (auto tiles) {err_auto}"
    print("KERNEL_OK")
</pallas_src>

<mosaic_0001>
module attributes {stable_mosaic.version = 11 : i64} {
  func.func @angular_margin_kernel(%arg0: i32, %arg1: i32, %arg2: memref<8x64xbf16, #tpu.memory_space<vmem>>, %arg3: memref<8x1xf32, #tpu.memory_space<vmem>>, %arg4: memref<8x1xf32, #tpu.memory_space<vmem>>, %arg5: memref<8x1xi32, #tpu.memory_space<vmem>>, %arg6: memref<64x128xbf16, #tpu.memory_space<vmem>>, %arg7: memref<8x128xf32, #tpu.memory_space<vmem>>) attributes {dimension_semantics = [#tpu.dimension_semantics<parallel>, #tpu.dimension_semantics<parallel>], iteration_bounds = array<i64: 2, 2>, scalar_prefetch = 0 : i64, scratch_operands = 0 : i64, tpu.core_type = #tpu.core_type<tc>, window_params = [{transform_indices = @transform_0, window_bounds = array<i64: 8, 64>}, {transform_indices = @transform_1, window_bounds = array<i64: 8, 1>}, {transform_indices = @transform_2, window_bounds = array<i64: 8, 1>}, {transform_indices = @transform_3, window_bounds = array<i64: 8, 1>}, {transform_indices = @transform_4, window_bounds = array<i64: 64, 128>}, {transform_indices = @transform_5, window_bounds = array<i64: 8, 128>}]} {
    %c0 = arith.constant 0 : index
    %c0_0 = arith.constant 0 : index
    %0 = vector.load %arg2[%c0, %c0_0] : memref<8x64xbf16, #tpu.memory_space<vmem>>, vector<8x64xbf16>
    %c0_1 = arith.constant 0 : index
    %c0_2 = arith.constant 0 : index
    %1 = vector.load %arg6[%c0_1, %c0_2] : memref<64x128xbf16, #tpu.memory_space<vmem>>, vector<64x128xbf16>
    %cst = arith.constant dense<0.000000e+00> : vector<8x128xf32>
    %2 = tpu.matmul %0, %1, %cst {dimension_numbers = #tpu.dot_dimension_numbers<[1], [0], [0], [1], [0, 0, 1, 1], [], []>} : vector<8x64xbf16>, vector<64x128xbf16>, vector<8x128xf32> -> vector<8x128xf32>
    %c0_3 = arith.constant 0 : index
    %c0_4 = arith.constant 0 : index
    %3 = vector.load %arg3[%c0_3, %c0_4] : memref<8x1xf32, #tpu.memory_space<vmem>>, vector<8x1xf32>
    %4 = vector.broadcast %3 : vector<8x1xf32> to vector<8x128xf32>
    %5 = arith.mulf %2, %4 : vector<8x128xf32>
    %cst_5 = arith.constant -0.999989986 : f32
    %cst_6 = arith.constant 0.999989986 : f32
    %6 = vector.broadcast %cst_5 : f32 to vector<8x128xf32>
    %7 = arith.maximumf %6, %5 : vector<8x128xf32>
    %8 = vector.broadcast %cst_6 : f32 to vector<8x128xf32>
    %9 = arith.minimumf %8, %7 : vector<8x128xf32>
    %10 = arith.mulf %9, %9 : vector<8x128xf32>
    %cst_7 = arith.constant 1.000000e+00 : f32
    %11 = vector.broadcast %cst_7 : f32 to vector<8x128xf32>
    %12 = arith.subf %11, %10 : vector<8x128xf32>
    %cst_8 = arith.constant 0.000000e+00 : f32
    %13 = vector.broadcast %cst_8 : f32 to vector<8x128xf32>
    %14 = arith.maximumf %12, %13 : vector<8x128xf32>
    %15 = math.sqrt %14 : vector<8x128xf32>
    %cst_9 = arith.constant -0.87758255 : f32
    %16 = vector.broadcast %cst_9 : f32 to vector<8x128xf32>
    %17 = arith.cmpf olt, %9, %16 : vector<8x128xf32>
    %cst_10 = arith.constant 0.87758255 : f32
    %18 = vector.broadcast %cst_10 : f32 to vector<8x128xf32>
    %19 = arith.mulf %9, %18 : vector<8x128xf32>
    %cst_11 = arith.constant 0.47942555 : f32
    %20 = vector.broadcast %cst_11 : f32 to vector<8x128xf32>
    %21 = arith.mulf %15, %20 : vector<8x128xf32>
    %22 = arith.subf %19, %21 : vector<8x128xf32>
    %cst_12 = arith.constant -1.000000e+00 : f32
    %23 = vector.broadcast %cst_12 : f32 to vector<8x128xf32>
    %24 = arith.select %17, %23, %22 : vector<8x128xi1>, vector<8x128xf32>
    %c0_13 = arith.constant 0 : index
    %c0_14 = arith.constant 0 : index
    %25 = vector.load %arg5[%c0_13, %c0_14] : memref<8x1xi32, #tpu.memory_space<vmem>>, vector<8x1xi32>
    %c128_i32 = arith.constant 128 : i32
    %26 = arith.muli %arg1, %c128_i32 : i32
    %27 = tpu.iota {dimensions = array<i32: 1>} : vector<1x128xi32>
    %28 = vector.broadcast %26 : i32 to vector<1x128xi32>
    %29 = arith.addi %28, %27 : vector<1x128xi32>
    %30 = vector.broadcast %29 : vector<1x128xi32> to vector<8x128xi32>
    %31 = vector.broadcast %25 : vector<8x1xi32> to vector<8x128xi32>
    %32 = arith.cmpi eq, %30, %31 : vector<8x128xi32>
    %c0_i32 = arith.constant 0 : i32
    %33 = vector.broadcast %c0_i32 : i32 to vector<8x1xi32>
    %34 = arith.cmpi sge, %25, %33 : vector<8x1xi32>
    %35 = vector.broadcast %34 : vector<8x1xi1> to vector<8x128xi1>
    %36 = arith.andi %32, %35 : vector<8x128xi1>
    %37 = arith.select %36, %24, %9 : vector<8x128xi1>, vector<8x128xf32>
    %c0_15 = arith.constant 0 : index
    %c0_16 = arith.constant 0 : index
    %38 = vector.load %arg4[%c0_15, %c0_16] : memref<8x1xf32, #tpu.memory_space<vmem>>, vector<8x1xf32>
    %39 = vector.broadcast %38 : vector<8x1xf32> to vector<8x128xf32>
    %40 = arith.mulf %39, %37 : vector<8x128xf32>
    %c0_17 = arith.constant 0 : index
    %c0_18 = arith.constant 0 : index
    %41 = vector.load %arg7[%c0_17, %c0_18] : memref<8x128xf32, #tpu.memory_space<vmem>>, vector<8x128xf32>
    tpu.vector_store %arg7[%c0_17, %c0_18], %40 {strides = array<i32>} : memref<8x128xf32, #tpu.memory_space<vmem>>, vector<8x128xf32>,
    return
  }
  func.func @transform_0(%arg0: i32, %arg1: i32) -> (i32, i32) {
    %c0_i32 = arith.constant 0 : i32
    %c0_i32_0 = arith.constant 0 : i32
    return %arg0, %c0_i32 : i32, i32
  }
  func.func @transform_1(%arg0: i32, %arg1: i32) -> (i32, i32) {
    %c0_i32 = arith.constant 0 : i32
    %c0_i32_0 = arith.constant 0 : i32
    return %arg0, %c0_i32 : i32, i32
  }
  func.func @transform_2(%arg0: i32, %arg1: i32) -> (i32, i32) {
    %c0_i32 = arith.constant 0 : i32
    %c0_i32_0 = arith.constant 0 : i32
    return %arg0, %c0_i32 : i32, i32
  }
  func.func @transform_3(%arg0: i32, %arg1: i32) -> (i32, i32) {
    %c0_i32 = arith.constant 0 : i32
    %c0_i32_0 = arith.constant 0 : i32
    return %arg0, %c0_i32 : i32, i32
  }
  func.func @transform_4(%arg0: i32, %arg1: i32) -> (i32, i32) {
    %c0_i32 = arith.constant 0 : i32
    %c0_i32_0 = arith.constant 0 : i32
    return %c0_i32, %arg1 : i32, i32
  }
  func.func @transform_5(%arg0: i32, %arg1: i32) -> (i32, i32) {
    %c0_i32 = arith.constant 0 : i32
    return %arg0, %arg1 : i32, i32
  }
}

</mosaic_0001>

<llo_original>
// kernel: tpu_custom_call.1
$region0: #{tpu_custom_call.1}
  #allocation0 [shape = 'u32[]', space=smem, size = 0x4, offset = 0x4, fixed_abs, tag = 'smem constant byte address 0x4 - core index']
  #allocation1 [shape = 'u32[144,128]{1,0:T(1,128)}', space=vmem, size = 0x12000, scoped, tag = 'internal scratch']
  %s0 = inlined_call_operand.hbm [shape: bf16[16,64], index: 0, kind: input, shape index: {}]
  %s1 = inlined_call_operand.vmem [shape: f32[16,1], index: 1, kind: input, shape index: {}]
  %s2 = inlined_call_operand.vmem [shape: f32[16,1], index: 2, kind: input, shape index: {}]
  %s3 = inlined_call_operand.vmem [shape: s32[16,1], index: 3, kind: input, shape index: {}]
  %s4 = inlined_call_operand.vmem [shape: bf16[64,256], index: 4, kind: input, shape index: {}]
  %s5 = inlined_call_operand.hbm [shape: f32[16,256], index: 5, kind: output, shape index: {}]
  %s6 = sld [smem:[#allocation0]]
  $region98: #{tpu_custom_call.1} parent=0
    _
  %s8 = ssub.s32 1, %s6
  %s9 = scalar_select 0, %s8, %s6
  $region1: #{tpu_custom_call.1} parent=0
    #allocation2 [shape = 'u8[4096]{0}', space=vmem, size = 0x1000, scoped, tag = 'input window, operand 0']
    #allocation3 [shape = 's32[2]{0}', space=sflag, size = 0x8, scoped, tag = 'scoped memory for tpu_custom_call.1']
    #allocation4 [shape = 's32[2]{0}', space=sflag, size = 0x8, scoped, tag = 'scoped memory for tpu_custom_call.1']
    #allocation5 [shape = 'u8[32768]{0}', space=vmem, size = 0x8000, scoped, tag = 'input window, operand 4']
    #allocation6 [shape = 'u8[8192]{0}', space=vmem, size = 0x2000, scoped, tag = 'output window, operand 0']
    %10 = vsyncpa [#allocation3], 0
    %s11 = scalar_lea.sflag [#allocation3], 1
    %12 = vsyncpa %s11, 0
    %13 = vsyncpa [#allocation4], 0
    %s14 = scalar_lea.sflag [#allocation4], 1
    %15 = vsyncpa %s14, 0
    loop: start=0, step=1, limit=6
    $region2: #{tpu_custom_call.1} parent=1 // loop_pre_header
      _
    $region3: #{tpu_custom_call.1} parent=1 // loop_header
      %s17 = sphi 0, %s21
      %p18 = scmp.ge.s32.totalorder %s17, 6
      %s24 = sphi 0, %s36
      %s25 = sphi 0, %s32
      %s26 = sphi 0, %s24
      %s27 = sphi 0, %s25
      %s28 = sphi 0, %s26
      %s29 = sphi 0, %s27
      %s39 = sphi 0, %s41
      %s42 = sphi 0, %s39
      %s43 = sphi 0, %s42
      %s59 = sphi 0, %s43
      %s65 = sphi 0, %s67
      %s68 = sphi 0, %s65
      %s69 = sphi 0, %s68
      %s85 = sphi 0, %s69
      %s91 = sphi 0, %s93
      %s94 = sphi 0, %s91
      %s95 = sphi 0, %s94
      %s111 = sphi 0, %s95
      %s117 = sphi 0, %s119
      %s120 = sphi 0, %s117
      %s121 = sphi 0, %s120
      %s137 = sphi 0, %s121
      %s143 = sphi 0, %s145
      %s146 = sphi 0, %s143
      %s147 = sphi 0, %s146
      %s163 = sphi 0, %s147
      %s171 = sphi 0, %s173
      %s174 = sphi 0, %s171
      %s175 = sphi 0, %s174
      %s191 = sphi 0, %s175
    $region4: #{tpu_custom_call.1} parent=1 // loop_header_branch
      %20 = sbr.rel (%p18) target = $region8
    $region5: #{tpu_custom_call.1} parent=1 // loop_body
      %s22 = ssub.s32 %s17, 1
      %s23 = ssub.s32 %s17, 2
      %s30 = sadd.s32 1, %s25
      %p31 = scmp.ge.s32.totalorder %s30, 2
      %s32 = scalar_select %p31, 0, %s30
      %s33 = sadd.s32 1, %s24
      %s34 = scalar_select %p31, %s33, %s24
      %p35 = scmp.ge.s32.totalorder %s34, 2
      %s36 = scalar_select %p35, 0, %s34
      %s37 = ssub.s32 %s24, %s36
      %p38 = scmp.eq.s32.totalorder %s37, 0
      %s40 = sadd.s32 %s39, 1
      %s41 = scalar_select %p38, %s39, %s40
      %p44 = pneg %p38
      %p45 = scmp.eq.s32.totalorder %s17, 3
      %p46 = por %p44, %p45
      %p47 = scmp.ne.s32.totalorder %s39, %s42
      %p48 = scmp.eq.s32.totalorder %s17, 0
      %p49 = por %p47, %p48
      %p50 = scmp.ne.s32.totalorder %s39, %s42
      %p51 = scmp.eq.s32.totalorder %s22, 3
      %p52 = por %p50, %p51
      %p53 = scmp.ne.s32.totalorder %s42, %s43
      %p54 = scmp.eq.s32.totalorder %s22, 0
      %p55 = por %p53, %p54
      %p56 = scmp.ne.s32.totalorder %s42, %s43
      %p57 = scmp.eq.s32.totalorder %s23, 3
      %p58 = por %p56, %p57
      %p60 = scmp.ne.s32.totalorder %s43, %s59
      %p61 = scmp.eq.s32.totalorder %s23, 0
      %p62 = por %p60, %p61
      %s63 = ssub.s32 %s24, %s36
      %p64 = scmp.eq.s32.totalorder %s63, 0
      %s66 = sadd.s32 %s65, 1
      %s67 = scalar_select %p64, %s65, %s66
      %p70 = pneg %p64
      %p71 = scmp.eq.s32.totalorder %s17, 3
      %p72 = por %p70, %p71
      %p73 = scmp.ne.s32.totalorder %s65, %s68
      %p74 = scmp.eq.s32.totalorder %s17, 0
      %p75 = por %p73, %p74
      %p76 = scmp.ne.s32.totalorder %s65, %s68
      %p77 = scmp.eq.s32.totalorder %s22, 3
      %p78 = por %p76, %p77
      %p79 = scmp.ne.s32.totalorder %s68, %s69
      %p80 = scmp.eq.s32.totalorder %s22, 0
      %p81 = por %p79, %p80
      %p82 = scmp.ne.s32.totalorder %s68, %s69
      %p83 = scmp.eq.s32.totalorder %s23, 3
      %p84 = por %p82, %p83
      %p86 = scmp.ne.s32.totalorder %s69, %s85
      %p87 = scmp.eq.s32.totalorder %s23, 0
      %p88 = por %p86, %p87
      %s89 = ssub.s32 %s24, %s36
      %p90 = scmp.eq.s32.totalorder %s89, 0
      %s92 = sadd.s32 %s91, 1
      %s93 = scalar_select %p90, %s91, %s92
      %p96 = pneg %p90
      %p97 = scmp.eq.s32.totalorder %s17, 3
      %p98 = por %p96, %p97
      %p99 = scmp.ne.s32.totalorder %s91, %s94
      %p100 = scmp.eq.s32.totalorder %s17, 0
      %p101 = por %p99, %p100
      %p102 = scmp.ne.s32.totalorder %s91, %s94
      %p103 = scmp.eq.s32.totalorder %s22, 3
      %p104 = por %p102, %p103
      %p105 = scmp.ne.s32.totalorder %s94, %s95
      %p106 = scmp.eq.s32.totalorder %s22, 0
      %p107 = por %p105, %p106
      %p108 = scmp.ne.s32.totalorder %s94, %s95
      %p109 = scmp.eq.s32.totalorder %s23, 3
      %p110 = por %p108, %p109
      %p112 = scmp.ne.s32.totalorder %s95, %s111
      %p113 = scmp.eq.s32.totalorder %s23, 0
      %p114 = por %p112, %p113
      %s115 = ssub.s32 %s24, %s36
      %p116 = scmp.eq.s32.totalorder %s115, 0
      %s118 = sadd.s32 %s117, 1
      %s119 = scalar_select %p116, %s117, %s118
      %p122 = pneg %p116
      %p123 = scmp.eq.s32.totalorder %s17, 3
      %p124 = por %p122, %p123
      %p125 = scmp.ne.s32.totalorder %s117, %s120
      %p126 = scmp.eq.s32.totalorder %s17, 0
      %p127 = por %p125, %p126
      %p128 = scmp.ne.s32.totalorder %s117, %s120
      %p129 = scmp.eq.s32.totalorder %s22, 3
      %p130 = por %p128, %p129
      %p131 = scmp.ne.s32.totalorder %s120, %s121
      %p132 = scmp.eq.s32.totalorder %s22, 0
      %p133 = por %p131, %p132
      %p134 = scmp.ne.s32.totalorder %s120, %s121
      %p135 = scmp.eq.s32.totalorder %s23, 3
      %p136 = por %p134, %p135
      %p138 = scmp.ne.s32.totalorder %s121, %s137
      %p139 = scmp.eq.s32.totalorder %s23, 0
      %p140 = por %p138, %p139
      %s141 = ssub.s32 %s25, %s32
      %p142 = scmp.eq.s32.totalorder %s141, 0
      %s144 = sadd.s32 %s143, 1
      %s145 = scalar_select %p142, %s143, %s144
      %p148 = pneg %p142
      %p149 = scmp.eq.s32.totalorder %s17, 3
      %p150 = por %p148, %p149
      %p151 = scmp.ne.s32.totalorder %s143, %s146
      %p152 = scmp.eq.s32.totalorder %s17, 0
      %p153 = por %p151, %p152
      %p154 = scmp.ne.s32.totalorder %s143, %s146
      %p155 = scmp.eq.s32.totalorder %s22, 3
      %p156 = por %p154, %p155
      %p157 = scmp.ne.s32.totalorder %s146, %s147
      %p158 = scmp.eq.s32.totalorder %s22, 0
      %p159 = por %p157, %p158
      %p160 = scmp.ne.s32.totalorder %s146, %s147
      %p161 = scmp.eq.s32.totalorder %s23, 3
      %p162 = por %p160, %p161
      %p164 = scmp.ne.s32.totalorder %s147, %s163
      %p165 = scmp.eq.s32.totalorder %s23, 0
      %p166 = por %p164, %p165
      %s167 = ssub.s32 %s24, %s36
      %s168 = ssub.s32 %s25, %s32
      %s169 = sor.u32 %s167, %s168
      %p170 = scmp.eq.s32.totalorder %s169, 0
      %s172 = sadd.s32 %s171, 1
      %s173 = scalar_select %p170, %s171, %s172
      %p176 = pneg %p170
      %p177 = scmp.eq.s32.totalorder %s17, 3
      %p178 = por %p176, %p177
      %p179 = scmp.ne.s32.totalorder %s171, %s174
      %p180 = scmp.eq.s32.totalorder %s17, 0
      %p181 = por %p179, %p180
      %p182 = scmp.ne.s32.totalorder %s171, %s174
      %p183 = scmp.eq.s32.totalorder %s22, 3
      %p184 = por %p182, %p183
      %p185 = scmp.ne.s32.totalorder %s174, %s175
      %p186 = scmp.eq.s32.totalorder %s22, 0
      %p187 = por %p185, %p186
      %p188 = scmp.ne.s32.totalorder %s174, %s175
      %p189 = scmp.eq.s32.totalorder %s23, 3
      %p190 = por %p188, %p189
      %p192 = scmp.ne.s32.totalorder %s175, %s191
      %p193 = scmp.eq.s32.totalorder %s23, 0
      %p194 = por %p192, %p193
      %p195 = scmp.le.s32.totalorder 1, %s17
      %p196 = scmp.lt.s32.totalorder %s17, 5
      %p197 = pnand %p195, %p196
      %p198 = pneg %p197
      // Predicated region
      $region9: #{tpu_custom_call.1} parent=5 // pred_check
        _
      $region10: #{tpu_custom_call.1} parent=5 // pred_check_branch
        %200 = sbr.rel (%p197) target = $region12
      $region11: #{tpu_custom_call.1} parent=5 // pred_region
        %s201 = ssub.s32 %s17, 1
      $region12: #{tpu_custom_call.1} parent=5 // pred_fallthru
        _
      %p202 = scmp.lt.s32.totalorder %s17, 4
      // Predicated region
      $region13: #{tpu_custom_call.1} parent=5 // pred_check
        %p203 = pneg %p202
      $region14: #{tpu_custom_call.1} parent=5 // pred_check_branch
        %205 = sbr.rel (%p203) target = $region16
      $region15: #{tpu_custom_call.1} parent=5 // pred_region
        // Predicated region
        $region17: #{tpu_custom_call.1} parent=15 // pred_check
          %p206 = pneg %p49
        $region18: #{tpu_custom_call.1} parent=15 // pred_check_branch
          %208 = sbr.rel (%p206) target = $region20
        $region19: #{tpu_custom_call.1} parent=15 // pred_region
          %s209 = sand.u32 %s39, 1
          %s210 = scalar_lea.sflag [#allocation3], %s209
          %s211 = sand.u32 %s39, 1
          %s212 = smul.addr %s211, 4
          %s213 = scalar_lea.vmem [#allocation2], %s212
          %s215 = ssub.s32 64, 64
          %216 = vsyncadd %s210, %s215
          %s217 = smul.addr %s24, 64
          %s218 = scalar_lea.hbm %s0, %s217
          %s220 = sshll.u32 %s213, 4
          %s221 = int_to_ptr.vmem [resolvable:$true] %s220
          %223 = dma.hbm_to_vmem [thread:$0]  %s218, 64, %s221, %s210
        $region20: #{tpu_custom_call.1} parent=15 // pred_fallthru
          _
        // Predicated region
        $region21: #{tpu_custom_call.1} parent=15 // pred_check
          %p224 = pneg %p75
        $region22: #{tpu_custom_call.1} parent=15 // pred_check_branch
          %226 = sbr.rel (%p224) target = $region24
        $region23: #{tpu_custom_call.1} parent=15 // pred_region
          %p227 = scmp.lt.s32.totalorder %s24, 1
          %s228 = scalar_select %p227, %s24, 1
          %s229 = smul.addr %s228, 8
          %s230 = scalar_lea.vmem %s1, %s229
        $region24: #{tpu_custom_call.1} parent=15 // pred_fallthru
          _
        // Predicated region
        $region25: #{tpu_custom_call.1} parent=15 // pred_check
          %p231 = pneg %p101
        $region26: #{tpu_custom_call.1} parent=15 // pred_check_branch
          %233 = sbr.rel (%p231) target = $region28
        $region27: #{tpu_custom_call.1} parent=15 // pred_region
          %p234 = scmp.lt.s32.totalorder %s24, 1
          %s235 = scalar_select %p234, %s24, 1
          %s236 = smul.addr %s235, 8
          %s237 = scalar_lea.vmem %s2, %s236
        $region28: #{tpu_custom_call.1} parent=15 // pred_fallthru
          _
        // Predicated region
        $region29: #{tpu_custom_call.1} parent=15 // pred_check
          %p238 = pneg %p127
        $region30: #{tpu_custom_call.1} parent=15 // pred_check_branch
          %240 = sbr.rel (%p238) target = $region32
        $region31: #{tpu_custom_call.1} parent=15 // pred_region
          %p241 = scmp.lt.s32.totalorder %s24, 1
          %s242 = scalar_select %p241, %s24, 1
          %s243 = smul.addr %s242, 8
          %s244 = scalar_lea.vmem %s3, %s243
        $region32: #{tpu_custom_call.1} parent=15 // pred_fallthru
          _
        // Predicated region
        $region33: #{tpu_custom_call.1} parent=15 // pred_check
          %p245 = pneg %p153
        $region34: #{tpu_custom_call.1} parent=15 // pred_check_branch
          %247 = sbr.rel (%p245) target = $region36
        $region35: #{tpu_custom_call.1} parent=15 // pred_region
          %s248 = sand.u32 %s143, 1
          %s249 = sand.u32 %s143, 1
          %s250 = smul.addr %s249, 32
          %s251 = scalar_lea.vmem [#allocation5], %s250
          %s252 = smul.addr %s25, 4
          %s253 = scalar_lea.vmem %s4, %s252
          // Predicated region
          $region37: #{tpu_custom_call.1} parent=35 // pred_check
            _
          $region38: #{tpu_custom_call.1} parent=35 // pred_check_branch
            %255 = sbr.rel (0) target = $region40
          $region39: #{tpu_custom_call.1} parent=35 // pred_region
            // Predicated region
            $region41: #{tpu_custom_call.1} parent=39 // pred_check
              _
            $region42: #{tpu_custom_call.1} parent=39 // pred_check_branch
              %257 = sbr.rel target = $region44
            $region43: #{tpu_custom_call.1} parent=39 // pred_region
              // Predicated region
              $region56: #{tpu_custom_call.1} parent=43 // pred_check
                _
              $region57: #{tpu_custom_call.1} parent=43 // pred_check_branch
                %286 = sbr.rel (0) target = $region59
              $region58: #{tpu_custom_call.1} parent=43 // pred_region
                loop: start=0, step=1, limit=1
                $region60: #{tpu_custom_call.1} parent=58 // loop_pre_header
                  _
                $region61: #{tpu_custom_call.1} parent=58 // loop_header
                  %s288 = sphi 0, %s292
                  %p289 = scmp.ge.s32.totalorder %s288, 1
                  %s293 = sphi %s253, %s253
                  %s294 = sphi %s251, %s251
                $region62: #{tpu_custom_call.1} parent=58 // loop_header_branch
                  %291 = sbr.rel (%p289) target = $region66
                $region63: #{tpu_custom_call.1} parent=58 // loop_body
                  _
                $region64: #{tpu_custom_call.1} parent=58 // loop_footer
                  %s292 = sadd.s32 1, %s288
                $region65: #{tpu_custom_call.1} parent=58 // loop_footer_branch
                  %287 = sbr.rel target = $region61
                $region66: #{tpu_custom_call.1} parent=58 // loop_exit
                  _
                loop: start=0, step=1, limit=1
                $region67: #{tpu_custom_call.1} parent=58 // loop_pre_header
                  _
                $region68: #{tpu_custom_call.1} parent=58 // loop_header
                  %s297 = sphi 0, %s301
                  %p298 = scmp.ge.s32.totalorder %s297, 1
                  %s302 = sphi %s253, %s253
                  %s303 = sphi %s251, %s251
                $region69: #{tpu_custom_call.1} parent=58 // loop_header_branch
                  %300 = sbr.rel (%p298) target = $region73
                $region70: #{tpu_custom_call.1} parent=58 // loop_body
                  %v304 = vld [vmem:[%s302] sm:$0xf]
                  %305 = vst [vmem:[%s303] sm:$0xf] %v304
                  %v306 = vld [vmem:[%s302 + $0x8] sm:$0xf]
                  %307 = vst [vmem:[%s303 + $0x4] sm:$0xf] %v306
                  %v308 = vld [vmem:[%s302 + $0x10] sm:$0xf]
                  %309 = vst [vmem:[%s303 + $0x8] sm:$0xf] %v308
                  %v310 = vld [vmem:[%s302 + $0x18] sm:$0xf]
                  %311 = vst [vmem:[%s303 + $0xc] sm:$0xf] %v310
                  %v312 = vld [vmem:[%s302 + $0x20] sm:$0xf]
                  %313 = vst [vmem:[%s303 + $0x10] sm:$0xf] %v312
                  %v314 = vld [vmem:[%s302 + $0x28] sm:$0xf]
                  %315 = vst [vmem:[%s303 + $0x14] sm:$0xf] %v314
                  %v316 = vld [vmem:[%s302 + $0x30] sm:$0xf]
                  %317 = vst [vmem:[%s303 + $0x18] sm:$0xf] %v316
                  %v318 = vld [vmem:[%s302 + $0x38] sm:$0xf]
                  %319 = vst [vmem:[%s303 + $0x1c] sm:$0xf] %v318
                $region71: #{tpu_custom_call.1} parent=58 // loop_footer
                  %s301 = sadd.s32 1, %s297
                $region72: #{tpu_custom_call.1} parent=58 // loop_footer_branch
                  %296 = sbr.rel target = $region68
                $region73: #{tpu_custom_call.1} parent=58 // loop_exit
                  _
              $region59: #{tpu_custom_call.1} parent=43 // pred_fallthru
                _
            $region44: #{tpu_custom_call.1} parent=39 // pred_fallthru
              _
            // Predicated region
            $region45: #{tpu_custom_call.1} parent=39 // pred_check
              _
            $region46: #{tpu_custom_call.1} parent=39 // pred_check_branch
              %259 = sbr.rel (0) target = $region48
            $region47: #{tpu_custom_call.1} parent=39 // pred_region
              loop: start=0, step=1, limit=1
              $region49: #{tpu_custom_call.1} parent=47 // loop_pre_header
                _
              $region50: #{tpu_custom_call.1} parent=47 // loop_header
                %s262 = sphi 0, %s266
                %p263 = scmp.ge.s32.totalorder %s262, 1
                %s267 = sphi %s253, %s253
                %s268 = sphi %s251, %s251
              $region51: #{tpu_custom_call.1} parent=47 // loop_header_branch
                %265 = sbr.rel (%p263) target = $region55
              $region52: #{tpu_custom_call.1} parent=47 // loop_body
                %v269 = vld [vmem:[%s267] sm:$0xf]
                %270 = vst [vmem:[%s268] sm:$0xf] %v269
                %v271 = vld [vmem:[%s267 + $0x8] sm:$0xf]
                %272 = vst [vmem:[%s268 + $0x4] sm:$0xf] %v271
                %v273 = vld [vmem:[%s267 + $0x10] sm:$0xf]
                %274 = vst [vmem:[%s268 + $0x8] sm:$0xf] %v273
                %v275 = vld [vmem:[%s267 + $0x18] sm:$0xf]
                %276 = vst [vmem:[%s268 + $0xc] sm:$0xf] %v275
                %v277 = vld [vmem:[%s267 + $0x20] sm:$0xf]
                %278 = vst [vmem:[%s268 + $0x10] sm:$0xf] %v277
                %v279 = vld [vmem:[%s267 + $0x28] sm:$0xf]
                %280 = vst [vmem:[%s268 + $0x14] sm:$0xf] %v279
                %v281 = vld [vmem:[%s267 + $0x30] sm:$0xf]
                %282 = vst [vmem:[%s268 + $0x18] sm:$0xf] %v281
                %v283 = vld [vmem:[%s267 + $0x38] sm:$0xf]
                %284 = vst [vmem:[%s268 + $0x1c] sm:$0xf] %v283
              $region53: #{tpu_custom_call.1} parent=47 // loop_footer
                %s266 = sadd.s32 1, %s262
              $region54: #{tpu_custom_call.1} parent=47 // loop_footer_branch
                %261 = sbr.rel target = $region50
              $region55: #{tpu_custom_call.1} parent=47 // loop_exit
                _
            $region48: #{tpu_custom_call.1} parent=39 // pred_fallthru
              _
          $region40: #{tpu_custom_call.1} parent=35 // pred_fallthru
            _
          %320 = vnop
        $region36: #{tpu_custom_call.1} parent=15 // pred_fallthru
          _
      $region16: #{tpu_custom_call.1} parent=5 // pred_fallthru
        _
      %p321 = scmp.le.s32.totalorder 1, %s17
      %p322 = scmp.lt.s32.totalorder %s17, 5
      %p323 = pnand %p321, %p322
      %p324 = pneg %p323
      // Predicated region
      $region74: #{tpu_custom_call.1} parent=5 // pred_check
        _
      $region75: #{tpu_custom_call.1} parent=5 // pred_check_branch
        %326 = sbr.rel (%p323) target = $region77
      $region76: #{tpu_custom_call.1} parent=5 // pred_region
        %s327 = ssub.s32 %s17, 1
        %s328 = sand.u32 %s42, 1
        %s329 = scalar_lea.sflag [#allocation3], %s328
        %s330 = sand.u32 %s42, 1
        %s331 = smul.addr %s330, 4
        %s332 = scalar_lea.vmem [#allocation2], %s331
        // Predicated region
        $region78: #{tpu_custom_call.1} parent=76 // pred_check
          %p333 = pneg %p55
        $region79: #{tpu_custom_call.1} parent=76 // pred_check_branch
          %335 = sbr.rel (%p333) target = $region81
        $region80: #{tpu_custom_call.1} parent=76 // pred_region
          %336 = dma.done %s329, 64
        $region81: #{tpu_custom_call.1} parent=76 // pred_fallthru
          _
        %s337 = sand.u32 %s146, 1
        %s338 = sand.u32 %s146, 1
        %s339 = smul.addr %s338, 32
        %s340 = scalar_lea.vmem [#allocation5], %s339
        // Predicated region
        $region82: #{tpu_custom_call.1} parent=76 // pred_check
          %p341 = pneg %p159
        $region83: #{tpu_custom_call.1} parent=76 // pred_check_branch
          %343 = sbr.rel (%p341) target = $region85
        $region84: #{tpu_custom_call.1} parent=76 // pred_region
          _
        $region85: #{tpu_custom_call.1} parent=76 // pred_fallthru
          _
        %s344 = sand.u32 %s42, 1
        %s345 = scalar_lea.sflag [#allocation3], %s344
        %s346 = sand.u32 %s42, 1
        %s347 = smul.addr %s346, 4
        %s348 = scalar_lea.vmem [#allocation2], %s347
        %p349 = pneg %p55
        %p350 = pneg %p52
        %p351 = scmp.lt.s32.totalorder %s26, 1
        %s352 = scalar_select %p351, %s26, 1
        %s353 = smul.addr %s352, 8
        %s354 = scalar_lea.vmem %s1, %s353
        %p355 = pneg %p81
        %p356 = pneg %p78
        %p357 = scmp.lt.s32.totalorder %s26, 1
        %s358 = scalar_select %p357, %s26, 1
        %s359 = smul.addr %s358, 8
        %s360 = scalar_lea.vmem %s2, %s359
        %p361 = pneg %p107
        %p362 = pneg %p104
        %p363 = scmp.lt.s32.totalorder %s26, 1
        %s364 = scalar_select %p363, %s26, 1
        %s365 = smul.addr %s364, 8
        %s366 = scalar_lea.vmem %s3, %s365
        %p367 = pneg %p133
        %p368 = pneg %p130
        %s369 = sand.u32 %s146, 1
        %s370 = sand.u32 %s146, 1
        %s371 = smul.addr %s370, 32
        %s372 = scalar_lea.vmem [#allocation5], %s371
        %p373 = pneg %p159
        %p374 = pneg %p156
        %p375 = pneg %p187
        %p376 = pneg %p184
        %s377 = sand.u32 %s174, 1
        %s378 = scalar_lea.sflag [#allocation4], %s377
        %s379 = sand.u32 %s174, 1
        %s380 = smul.addr %s379, 8
        %s381 = scalar_lea.vmem [#allocation6], %s380
        %p382 = scmp.lt.s32.totalorder %s26, 1
        %s383 = scalar_select %p382, %s26, 1
        %s384 = smul.addr %s383, 8
        %s385 = scalar_lea.vmem %s1, %s384
        %p386 = scmp.lt.s32.totalorder %s26, 1
        %s387 = scalar_select %p386, %s26, 1
        %s388 = smul.addr %s387, 8
        %s389 = scalar_lea.vmem %s2, %s388
        %p390 = scmp.lt.s32.totalorder %s26, 1
        %s391 = scalar_select %p390, %s26, 1
        %s392 = smul.addr %s391, 8
        %s393 = scalar_lea.vmem %s3, %s392
        %v395 = vld [vmem:[%s332] sm:$0xf]
        %v396 = vld [vmem:[%s340] sm:$0xf]
        %v397 = vld [vmem:[%s340 + $0x4] sm:$0xf]
        %v398 = vld [vmem:[%s340 + $0x8] sm:$0xf]
        %v399 = vld [vmem:[%s340 + $0xc] sm:$0xf]
        %v400 = vld [vmem:[%s340 + $0x10] sm:$0xf]
        %v401 = vld [vmem:[%s340 + $0x14] sm:$0xf]
        %v402 = vld [vmem:[%s340 + $0x18] sm:$0xf]
        %v403 = vld [vmem:[%s340 + $0x1c] sm:$0xf]
        %v412 = vunpack.c.l.b16 %v396
        %v413 = vunpack.c.l.b16 %v397
        %v414 = vunpack.c.l.b16 %v398
        %v415 = vunpack.c.l.b16 %v399
        %v416 = vunpack.c.l.b16 %v400
        %v417 = vunpack.c.l.b16 %v401
        %v418 = vunpack.c.l.b16 %v402
        %v419 = vunpack.c.l.b16 %v403
        %v420 = vpack.c.b16 %v413, %v412
        %v421 = vpack.c.b16 %v415, %v414
        %v422 = vpack.c.b16 %v417, %v416
        %v423 = vpack.c.b16 %v419, %v418
        %vm428 = vcmask 523264
        %v430 = vsel %vm428, %v395, 0
        %432 = vmatprep.subr.bf16.mxu0 0
        %433 = vmatpush1.bf16.msra.mxu0 %v420
        %434 = vmatprep.subr.bf16.mxu0 0
        %435 = vmatpush1.bf16.msra.mxu0 %v421
        %436 = vmatprep.subr.bf16.mxu0 0
        %437 = vmatpush1.bf16.msra.mxu0 %v422
        %438 = vmatprep.subr.bf16.mxu0 0
        %439 = vmatpush1.bf16.msra.mxu0 %v423
        %440 = vmatprep.subr.bf16.mxu0 0
        %441 = vmatpush1.bf16.msra.mxu0 0
        %442 = vmatprep.subr.bf16.mxu0 0
        %443 = vmatpush1.bf16.msra.mxu0 0
        %444 = vmatprep.subr.bf16.mxu0 0
        %445 = vmatpush1.bf16.msra.mxu0 0
        %446 = vmatprep.subr.bf16.mxu0 0
        %447 = vmatpush1.bf16.msra.mxu0 0
        %448 = vmatprep.subr.bf16.mxu0 0
        %449 = vmatpush1.bf16.msra.mxu0 0
        %450 = vmatprep.subr.bf16.mxu0 0
        %451 = vmatpush1.bf16.msra.mxu0 0
        %452 = vmatprep.subr.bf16.mxu0 0
        %453 = vmatpush1.bf16.msra.mxu0 0
        %454 = vmatprep.subr.bf16.mxu0 0
        %455 = vmatpush1.bf16.msra.mxu0 0
        %456 = vmatprep.subr.bf16.mxu0 0
        %457 = vmatpush1.bf16.msra.mxu0 0
        %458 = vmatprep.subr.bf16.mxu0 0
        %459 = vmatpush1.bf16.msra.mxu0 0
        %460 = vmatprep.subr.bf16.mxu0 0
        %461 = vmatpush1.bf16.msra.mxu0 0
        %462 = vmatprep.subr.bf16.mxu0 0
        %463 = vmatpush1.bf16.msra.mxu0 0
        %464 = vmatprep.mubr.bf16.mxu0 0
        %465 = vmatmul.mubr.bf16.gmra.mrb[0].mxu0 %v430
        %v466 = vpop.f32.mrb[0].mxu0
        %v467 = vadd.f32 0.0, %v466
        %v468 = vpop.f32.mrb[0].mxu0
        %v469 = vpop.f32.mrb[0].mxu0
        %v470 = vpop.f32.mrb[0].mxu0
        %471 = vdwg.mxu0
        %v472 = vld [vmem:[%s385] sm:$0xff]
        %474 = vset.pattern.permute.xlu0 0
        %475 = vperm.xlu0 %474, %v472
        %v476 = vpop.permute.xlu0 %475
        %v478 = vmul.f32 %v467, %v476
        %v479 = vmax.f32 %v478, -0.99999
        %v480 = vmin.f32 %v479, 0.99999
        %v481 = vmul.f32 %v480, %v480
        %v482 = vsub.f32 1.0, %v481
        %v483 = vmax.f32 %v482, 0.0
        %v484 = vrsqrt.pop %v483
        %v485 = vmul.f32 %v483, %v484
        %vm486 = vcmp.eq.f32.partialorder %v483, inf
        %v487 = vsel %vm486, %v483, %v485
        %vm488 = vcmp.eq.f32.partialorder %v483, 0.0
        %v489 = vand.u32 %v483, 2147483648
        %v490 = vsel %vm488, %v489, %v487
        %vm491 = vcmp.lt.f32.partialorder %v480, -0.87758255
        %v492 = vmul.f32 %v480, 0.87758255
        %v493 = vmul.f32 %v490, 0.47942555
        %v494 = vsub.f32 %v492, %v493
        %v495 = vsel %vm491, -1.0, %v494
        %v496 = vld [vmem:[%s393] sm:$0xff]
        %s497 = smul.u32 %s27, 128
        %v498 = vlaneseq
        %v499 = vand.u32 %v498, 127
        %v500 = vstv %s497
        %v501 = vadd.s32 %v500, %v499
        %502 = vset.pattern.permute.xlu0 0
        %503 = vperm.xlu0 %502, %v496
        %v504 = vpop.permute.xlu0 %503
        %vm505 = vcmp.eq.s32.totalorder %v501, %v504
        %vm506 = vcmp.ge.s32.totalorder %v496, 0
        %v507 = vsel %vm506, 1, 0
        %508 = vset.pattern.permute.xlu0 0
        %509 = vperm.xlu0 %508, %v507
        %v510 = vpop.permute.xlu0 %509
        %vm511 = vcmp.eq.s32.totalorder %v510, 1
        %vm512 = vmand %vm505, %vm511
        %v513 = vsel %vm512, %v495, %v480
        %v514 = vld [vmem:[%s389] sm:$0xff]
        %516 = vset.pattern.permute.xlu0 0
        %517 = vperm.xlu0 %516, %v514
        %v518 = vpop.permute.xlu0 %517
        %v520 = vmul.f32 %v518, %v513
        %521 = vst [vmem:[%s381] sm:$0xff] %v520
        %s522 = sand.u32 %s174, 1
        %s523 = scalar_lea.sflag [#allocation4], %s522
        %s524 = sand.u32 %s174, 1
        %s525 = smul.addr %s524, 8
        %s526 = scalar_lea.vmem [#allocation6], %s525
        // Predicated region
        $region86: #{tpu_custom_call.1} parent=76 // pred_check
          %p527 = pneg %p184
        $region87: #{tpu_custom_call.1} parent=76 // pred_check_branch
          %529 = sbr.rel (%p527) target = $region89
        $region88: #{tpu_custom_call.1} parent=76 // pred_region
          %s531 = ssub.s32 128, 128
          %532 = vsyncadd %s523, %s531
          %s533 = smul.addr %s26, 2
          %s534 = sadd.s32 %s27, %s533
          %s535 = smul.addr %s534, 128
          %s536 = scalar_lea.hbm %s5, %s535
          %s538 = sshll.u32 %s526, 4
          %s539 = int_to_ptr.vmem [resolvable:$true] %s538
          %541 = dma.vmem_to_hbm [thread:$0]  %s539, 128, %s536, %s523
        $region89: #{tpu_custom_call.1} parent=76 // pred_fallthru
          _
      $region77: #{tpu_custom_call.1} parent=5 // pred_fallthru
        _
      %p542 = scmp.le.s32.totalorder 2, %s17
      // Predicated region
      $region90: #{tpu_custom_call.1} parent=5 // pred_check
        %p543 = pneg %p542
      $region91: #{tpu_custom_call.1} parent=5 // pred_check_branch
        %545 = sbr.rel (%p543) target = $region93
      $region92: #{tpu_custom_call.1} parent=5 // pred_region
        %s546 = ssub.s32 %s17, 2
        // Predicated region
        $region94: #{tpu_custom_call.1} parent=92 // pred_check
          %p547 = pneg %p190
        $region95: #{tpu_custom_call.1} parent=92 // pred_check_branch
          %549 = sbr.rel (%p547) target = $region97
        $region96: #{tpu_custom_call.1} parent=92 // pred_region
          %s550 = sand.u32 %s175, 1
          %s551 = scalar_lea.sflag [#allocation4], %s550
          %s552 = sand.u32 %s175, 1
          %s553 = smul.addr %s552, 8
          %s554 = scalar_lea.vmem [#allocation6], %s553
          %555 = dma.done %s551, 128
        $region97: #{tpu_custom_call.1} parent=92 // pred_fallthru
          _
      $region93: #{tpu_custom_call.1} parent=5 // pred_fallthru
        _
    $region6: #{tpu_custom_call.1} parent=1 // loop_footer
      %s21 = sadd.s32 1, %s17
    $region7: #{tpu_custom_call.1} parent=1 // loop_footer_branch
      %16 = sbr.rel target = $region3
    $region8: #{tpu_custom_call.1} parent=1 // loop_exit
      _
    %556 = vsyncpa [#allocation3], 1
    %s557 = scalar_lea.sflag [#allocation3], 1
    %558 = vsyncpa %s557, 1
    %559 = vsyncpa [#allocation4], 1
    %s560 = scalar_lea.sflag [#allocation4], 1
    %561 = vsyncpa %s560, 1

</llo_original>
